<compile_context>
chip_gen: v7x
topology: tpu7x:2x2x1
jax: 0.10.0
libtpu: 0.0.40
codegen_flags: <defaults>
</compile_context>

<pallas_src>
import functools

import jax
import jax.numpy as jnp
from jax import lax
from jax.experimental import pallas as pl
from jax.experimental.pallas import tpu as pltpu

_EPS = 1e-7


def _round_up(x, m):
    return ((x + m - 1) // m) * m


# ----------------------------------------------------------------------------
# Fused criterion kernel
# ----------------------------------------------------------------------------
def _criterion_kernel(logits_ref, targets_ref, weight_ref, boxes_ref,
                      ce_out_ref, box_out_ref, acc_ref, *, n_valid_boxes):
    step = pl.program_id(0)
    lane2 = lax.broadcasted_iota(jnp.int32, (1, 2), 1)

    # ---- step 0: init CE accumulator and compute the (small) box losses ------
    @pl.when(step == 0)
    def _():
        acc_ref[...] = jnp.zeros_like(acc_ref)

        b = boxes_ref[...].astype(jnp.float32)            # [8, Mp]
        p, t = b[0:4, :], b[4:8, :]                        # [4, Mp] each
        mp = p.shape[1]
        valid = lax.broadcasted_iota(jnp.int32, (1, mp), 1) < n_valid_boxes

        # L1: sum over coords (sublanes) then over valid boxes (lanes)
        l1_per_box = jnp.sum(jnp.abs(p - t), axis=0, keepdims=True)   # [1, Mp]
        l1_sum = jnp.sum(jnp.where(valid, l1_per_box, 0.0))

        # cxcywh -> xyxy (all intermediates are lane-dense [1, Mp] vectors)
        pcx, pcy, pw, ph = p[0:1, :], p[1:2, :], p[2:3, :], p[3:4, :]
        tcx, tcy, tw, th = t[0:1, :], t[1:2, :], t[2:3, :], t[3:4, :]
        px1, py1 = pcx - 0.5 * pw, pcy - 0.5 * ph
        px2, py2 = pcx + 0.5 * pw, pcy + 0.5 * ph
        tx1, ty1 = tcx - 0.5 * tw, tcy - 0.5 * th
        tx2, ty2 = tcx + 0.5 * tw, tcy + 0.5 * th

        area_p = (px2 - px1) * (py2 - py1)
        area_t = (tx2 - tx1) * (ty2 - ty1)
        iw = jnp.maximum(jnp.minimum(px2, tx2) - jnp.maximum(px1, tx1), 0.0)
        ih = jnp.maximum(jnp.minimum(py2, ty2) - jnp.maximum(py1, ty1), 0.0)
        inter = iw * ih
        union = area_p + area_t - inter
        iou = inter * pl.reciprocal(union + _EPS, approx=True)

        cw = jnp.maximum(px2, tx2) - jnp.minimum(px1, tx1)
        ch = jnp.maximum(py2, ty2) - jnp.minimum(py1, ty1)
        area_c = cw * ch
        giou = iou - (area_c - union) * pl.reciprocal(area_c + _EPS, approx=True)
        giou_sum = jnp.sum(jnp.where(valid, 1.0 - giou, 0.0))

        box_out_ref[...] = jnp.where(lane2 == 0, l1_sum, giou_sum)

    # ---- every step: weighted cross-entropy partial sums over this row tile --
    logits = logits_ref[...].astype(jnp.float32)           # [TR, Cp] (f32 math)
    tgt = targets_ref[...]                                  # [TR, 1] int32
    w = weight_ref[...].astype(jnp.float32)                 # [1,  Cp]
    tr, cp = logits.shape

    m = jnp.max(logits, axis=-1, keepdims=True)
    z = logits - m
    lse = jnp.log(jnp.sum(jnp.exp(z), axis=-1, keepdims=True))   # [TR, 1]

    classes = lax.broadcasted_iota(jnp.int32, (tr, cp), 1)
    onehot = classes == tgt                                      # [TR, Cp]
    # fused one-hot reductions: no [TR, Cp] log-prob tensor is materialized
    z_y = jnp.sum(jnp.where(onehot, z, 0.0), axis=-1, keepdims=True)    # [TR, 1]
    w_row = jnp.sum(jnp.where(onehot, w, 0.0), axis=-1, keepdims=True)  # [TR, 1]
    nll = lse - z_y                                                     # [TR, 1]

    num_blk = jnp.sum(w_row * nll)
    den_blk = jnp.sum(w_row)
    acc_ref[...] += jnp.where(lane2 == 0, num_blk, den_blk)

    @pl.when(step == pl.num_programs(0) - 1)
    def _():
        ce_out_ref[...] = acc_ref[...]


def criterion_pallas_call(logits_p, targets_p, weight_p, boxes_p,
                          n_valid_boxes, row_tile):
    rp, cp = logits_p.shape
    mp = boxes_p.shape[1]
    grid = (rp // row_tile,)
    kernel = functools.partial(_criterion_kernel, n_valid_boxes=n_valid_boxes)
    ce, box = pl.pallas_call(
        kernel,
        out_shape=(
            jax.ShapeDtypeStruct((1, 2), jnp.float32),   # [ce_num, ce_den]
            jax.ShapeDtypeStruct((1, 2), jnp.float32),   # [l1_sum, giou_sum]
        ),
        grid_spec=pltpu.PrefetchScalarGridSpec(
            num_scalar_prefetch=0,
            grid=grid,
            in_specs=[
                pl.BlockSpec((row_tile, cp), lambda i: (i, 0)),   # logits row tile
                pl.BlockSpec((row_tile, 1), lambda i: (i, 0)),    # targets row tile
                pl.BlockSpec((1, cp), lambda i: (0, 0)),          # class weights
                pl.BlockSpec((8, mp), lambda i: (0, 0)),          # packed boxes
            ],
            out_specs=(
                pl.BlockSpec((1, 2), lambda i: (0, 0)),
                pl.BlockSpec((1, 2), lambda i: (0, 0)),
            ),
            scratch_shapes=[pltpu.VMEM((1, 2), jnp.float32)],
        ),
        compiler_params=pltpu.CompilerParams(
            dimension_semantics=("arbitrary",),        # CE accumulation axis
            vmem_limit_bytes=32 * 1024 * 1024,         # safe on v5e/v6e/v7x
        ),
    )(logits_p, targets_p, weight_p, boxes_p)
    return ce, box


# ----------------------------------------------------------------------------
# Criterion wrapper (plain-JAX glue around the fused Pallas kernel)
# ----------------------------------------------------------------------------
class Criterion:
    def __init__(self, matcher, num_classes, eos_coef):
        self.matcher = matcher
        self.num_classes = num_classes
        self.eos_coef = eos_coef
        empty_weight = jnp.ones((num_classes + 1,), jnp.float32)
        self.empty_weight = empty_weight.at[-1].set(eos_coef)

    def _get_src_permutation_idx(self, indices):
        batch_idx = jnp.concatenate(
            [jnp.full_like(src, i) for i, (src, _) in enumerate(indices)]
        )
        src_idx = jnp.concatenate([src for src, _ in indices])
        return batch_idx, src_idx

    def __call__(self, outputs, targets):
        indices = self.matcher(outputs, targets)
        batch_idx, src_idx = self._get_src_permutation_idx(indices)

        # ---------- classification targets (scatter stays in plain JAX) ------
        pred_class = outputs["pred_class"]                  # [B, Q, C+1]
        B, Q, C1 = pred_class.shape
        targets_class_o = jnp.concatenate(
            [t["classes"][J] for t, (_, J) in zip(targets, indices)]
        ).astype(jnp.int32)
        target_classes = jnp.full((B, Q), self.num_classes, jnp.int32)
        target_classes = target_classes.at[batch_idx, src_idx].set(targets_class_o)

        # ---------- pad to lane-dense layout (keep model dtype for logits) ----
        R = B * Q
        Cp = _round_up(C1, 128)
        TR = min(1024, _round_up(R, 8))
        Rp = _round_up(R, TR)

        neg = float(jnp.finfo(pred_class.dtype).min) / 2.0   # safe "-inf" substitute
        logits_p = jnp.full((Rp, Cp), neg, pred_class.dtype)
        logits_p = logits_p.at[:R, :C1].set(pred_class.reshape(R, C1))
        # padded rows get class id Cp (never matches an iota class -> zero weight)
        targets_p = jnp.full((Rp, 1), Cp, jnp.int32)
        targets_p = targets_p.at[:R, 0].set(target_classes.reshape(R))
        weight_p = jnp.zeros((1, Cp), jnp.float32)
        weight_p = weight_p.at[0, :C1].set(self.empty_weight)

        # ---------- matched boxes packed as [8, Mp] (boxes on the lane axis) --
        pred_bbox = outputs["pred_bbox"][batch_idx, src_idx].astype(jnp.float32)  # [M,4]
        tgt_bbox = jnp.concatenate(
            [t["bboxes"][i] for t, (_, i) in zip(targets, indices)], axis=0
        ).astype(jnp.float32)                                                     # [M,4]
        M = int(pred_bbox.shape[0])
        Mp = _round_up(max(M, 1), 128)
        pad_col = jnp.array([0.5, 0.5, 1.0, 1.0], jnp.float32)[:, None]  # benign unit box
        boxes_p = jnp.concatenate(
            [jnp.broadcast_to(pad_col, (4, Mp)), jnp.broadcast_to(pad_col, (4, Mp))],
            axis=0,
        )
        boxes_p = boxes_p.at[0:4, :M].set(pred_bbox.T)
        boxes_p = boxes_p.at[4:8, :M].set(tgt_bbox.T)

        ce, box = criterion_pallas_call(logits_p, targets_p, weight_p, boxes_p, M, TR)

        num_bboxes = sum(int(t["bboxes"].shape[0]) for t in targets)
        num_bboxes = jnp.maximum(jnp.asarray(num_bboxes, jnp.float32), 1.0)

        losses = {}
        losses["label_loss"] = ce[0, 0] / ce[0, 1]
        losses["l1_loss"] = box[0, 0] / num_bboxes
        losses["giou_loss"] = box[0, 1] / num_bboxes
        return losses


# TODO(synk): Hungarian matching (scipy.linear_sum_assignment) is a host-side
# combinatorial algorithm with no clean Pallas equivalent; a deterministic
# identity matcher is used here.
def identity_matcher(outputs, targets):
    indices = []
    for t in targets:
        n = t["bboxes"].shape[0]
        idx = jnp.arange(n, dtype=jnp.int32)
        indices.append((idx, idx))
    return indices


# ----------------------------------------------------------------------------
# Plain-JAX reference (for a loose correctness check)
# ----------------------------------------------------------------------------
def _reference_losses(outputs, targets, num_classes, eos_coef):
    B, Q, C1 = outputs["pred_class"].shape
    tc = jnp.full((B, Q), num_classes, jnp.int32)
    pb_list, tb_list = [], []
    for b, t in enumerate(targets):
        n = t["classes"].shape[0]
        tc = tc.at[b, :n].set(t["classes"])
        pb_list.append(outputs["pred_bbox"][b, :n])
        tb_list.append(t["bboxes"])
    w = jnp.ones((C1,), jnp.float32).at[-1].set(eos_coef)
    logits = outputs["pred_class"].reshape(B * Q, C1).astype(jnp.float32)
    y = tc.reshape(B * Q)
    logp = jax.nn.log_softmax(logits, axis=-1)
    nll = -jnp.take_along_axis(logp, y[:, None], axis=1)[:, 0]
    wy = w[y]
    label = jnp.sum(wy * nll) / jnp.sum(wy)

    p = jnp.concatenate(pb_list, 0).astype(jnp.float32)
    t_ = jnp.concatenate(tb_list, 0).astype(jnp.float32)
    nb = p.shape[0]
    l1 = jnp.sum(jnp.abs(p - t_)) / nb

    def xyxy(b):
        cx, cy, w_, h_ = b[:, 0], b[:, 1], b[:, 2], b[:, 3]
        return jnp.stack([cx - w_ / 2, cy - h_ / 2, cx + w_ / 2, cy + h_ / 2], -1)

    pb, tb = xyxy(p), xyxy(t_)
    area_p = (pb[:, 2] - pb[:, 0]) * (pb[:, 3] - pb[:, 1])
    area_t = (tb[:, 2] - tb[:, 0]) * (tb[:, 3] - tb[:, 1])
    iw = jnp.maximum(jnp.minimum(pb[:, 2], tb[:, 2]) - jnp.maximum(pb[:, 0], tb[:, 0]), 0.0)
    ih = jnp.maximum(jnp.minimum(pb[:, 3], tb[:, 3]) - jnp.maximum(pb[:, 1], tb[:, 1]), 0.0)
    inter = iw * ih
    union = area_p + area_t - inter
    iou = inter / union
    cw = jnp.maximum(pb[:, 2], tb[:, 2]) - jnp.minimum(pb[:, 0], tb[:, 0])
    ch = jnp.maximum(pb[:, 3], tb[:, 3]) - jnp.minimum(pb[:, 1], tb[:, 1])
    ac = cw * ch
    giou = iou - (ac - union) / ac
    return label, l1, jnp.sum(1.0 - giou) / nb


if __name__ == "__main__":
    import numpy as np

    key = jax.random.PRNGKey(0)
    B, Q, num_classes, N = 2, 8, 4, 3        # small synthetic shapes
    C1 = num_classes + 1

    k1, k2, k3 = jax.random.split(key, 3)
    pred_class = jax.random.normal(k1, (B, Q, C1), jnp.float32)
    pred_bbox = jax.nn.sigmoid(jax.random.normal(k2, (B, Q, 4), jnp.float32))

    outputs = {"pred_class": pred_class, "pred_bbox": pred_bbox}
    targets = []
    for b in range(B):
        kc, kb = jax.random.split(jax.random.fold_in(k3, b))
        classes = jax.random.randint(kc, (N,), 0, num_classes, jnp.int32)
        bboxes = jax.nn.sigmoid(jax.random.normal(kb, (N, 4), jnp.float32))
        targets.append({"classes": classes, "bboxes": bboxes})

    criterion = Criterion(identity_matcher, num_classes, eos_coef=0.1)
    losses = criterion(outputs, targets)
    losses = jax.tree_util.tree_map(jax.block_until_ready, losses)

    ref_label, ref_l1, ref_giou = _reference_losses(outputs, targets, num_classes, 0.1)

    for k_ in ("label_loss", "l1_loss", "giou_loss"):
        assert jnp.isfinite(losses[k_]), k_
    np.testing.assert_allclose(float(losses["label_loss"]), float(ref_label), rtol=2e-2, atol=2e-2)
    np.testing.assert_allclose(float(losses["l1_loss"]), float(ref_l1), rtol=2e-2, atol=2e-2)
    np.testing.assert_allclose(float(losses["giou_loss"]), float(ref_giou), rtol=2e-2, atol=2e-2)
    print("KERNEL_OK")
</pallas_src>

<mosaic_0001>
module attributes {stable_mosaic.version = 11 : i64} {
  func.func @_criterion_kernel(%arg0: i32, %arg1: memref<16x128xf32, #tpu.memory_space<vmem>>, %arg2: memref<16x1xi32, #tpu.memory_space<vmem>>, %arg3: memref<1x128xf32, #tpu.memory_space<vmem>>, %arg4: memref<8x128xf32, #tpu.memory_space<vmem>>, %arg5: memref<1x2xf32, #tpu.memory_space<vmem>>, %arg6: memref<1x2xf32, #tpu.memory_space<vmem>>, %arg7: memref<1x2xf32, #tpu.memory_space<vmem>>) attributes {dimension_semantics = [#tpu.dimension_semantics<arbitrary>], iteration_bounds = array<i64: 1>, scalar_prefetch = 0 : i64, scratch_operands = 1 : i64, tpu.core_type = #tpu.core_type<tc>, window_params = [{transform_indices = @transform_0, window_bounds = array<i64: 16, 128>}, {transform_indices = @transform_1, window_bounds = array<i64: 16, 1>}, {pipeline_mode = #tpu.pipeline_mode<synchronous>, transform_indices = @transform_2, window_bounds = array<i64: 1, 128>}, {pipeline_mode = #tpu.pipeline_mode<synchronous>, transform_indices = @transform_3, window_bounds = array<i64: 8, 128>}, {pipeline_mode = #tpu.pipeline_mode<synchronous>, transform_indices = @transform_4, window_bounds = array<i64: 1, 2>}, {pipeline_mode = #tpu.pipeline_mode<synchronous>, transform_indices = @transform_5, window_bounds = array<i64: 1, 2>}]} {
    %0 = tpu.iota {dimensions = array<i32: 1>} : vector<1x2xi32>
    %c0_i32 = arith.constant 0 : i32
    %1 = arith.cmpi eq, %arg0, %c0_i32 : i32
    %2 = arith.extui %1 : i1 to i32
    %c0_i32_0 = arith.constant 0 : i32
    %3 = arith.cmpi ne, %2, %c0_i32_0 : i32
    scf.if %3 {
      %cst_20 = arith.constant 0.000000e+00 : f32
      %49 = vector.broadcast %cst_20 : f32 to vector<1x2xf32>
      %c0_21 = arith.constant 0 : index
      %c0_22 = arith.constant 0 : index
      %50 = vector.load %arg7[%c0_21, %c0_22] : memref<1x2xf32, #tpu.memory_space<vmem>>, vector<1x2xf32>
      tpu.vector_store %arg7[%c0_21, %c0_22], %49 {strides = array<i32>} : memref<1x2xf32, #tpu.memory_space<vmem>>, vector<1x2xf32>,
      %c0_23 = arith.constant 0 : index
      %c0_24 = arith.constant 0 : index
      %51 = vector.load %arg4[%c0_23, %c0_24] : memref<8x128xf32, #tpu.memory_space<vmem>>, vector<8x128xf32>
      %52 = vector.extract_strided_slice %51 {offsets = [0, 0], sizes = [4, 128], strides = [1, 1]} : vector<8x128xf32> to vector<4x128xf32>
      %53 = vector.extract_strided_slice %51 {offsets = [4, 0], sizes = [4, 128], strides = [1, 1]} : vector<8x128xf32> to vector<4x128xf32>
      %54 = tpu.iota {dimensions = array<i32: 1>} : vector<1x128xi32>
      %c6_i32 = arith.constant 6 : i32
      %55 = vector.broadcast %c6_i32 : i32 to vector<1x128xi32>
      %56 = arith.cmpi slt, %54, %55 : vector<1x128xi32>
      %57 = arith.subf %52, %53 : vector<4x128xf32>
      %58 = math.absf %57 : vector<4x128xf32>
      %cst_25 = arith.constant dense<0.000000e+00> : vector<128xf32>
      %59 = vector.multi_reduction <add>, %58, %cst_25 [0] : vector<4x128xf32> to vector<128xf32>
      %60 = vector.shape_cast %59 : vector<128xf32> to vector<1x128xf32>
      %cst_26 = arith.constant 0.000000e+00 : f32
      %61 = vector.broadcast %cst_26 : f32 to vector<1x128xf32>
      %62 = arith.select %56, %60, %61 : vector<1x128xi1>, vector<1x128xf32>
      %63 = vector.shape_cast %62 : vector<1x128xf32> to vector<1x1x128xf32>
      %cst_27 = arith.constant dense<0.000000e+00> : vector<1xf32>
      %64 = vector.multi_reduction <add>, %63, %cst_27 [1, 2] : vector<1x1x128xf32> to vector<1xf32>
      %65 = vector.shape_cast %64 : vector<1xf32> to vector<1x1x1xf32>
      %66 = vector.extract %65[0, 0, 0] : f32 from vector<1x1x1xf32>
      %67 = vector.extract_strided_slice %52 {offsets = [0, 0], sizes = [1, 128], strides = [1, 1]} : vector<4x128xf32> to vector<1x128xf32>
      %68 = vector.extract_strided_slice %52 {offsets = [1, 0], sizes = [1, 128], strides = [1, 1]} : vector<4x128xf32> to vector<1x128xf32>
      %69 = vector.extract_strided_slice %52 {offsets = [2, 0], sizes = [1, 128], strides = [1, 1]} : vector<4x128xf32> to vector<1x128xf32>
      %70 = vector.extract_strided_slice %52 {offsets = [3, 0], sizes = [1, 128], strides = [1, 1]} : vector<4x128xf32> to vector<1x128xf32>
      %71 = vector.extract_strided_slice %53 {offsets = [0, 0], sizes = [1, 128], strides = [1, 1]} : vector<4x128xf32> to vector<1x128xf32>
      %72 = vector.extract_strided_slice %53 {offsets = [1, 0], sizes = [1, 128], strides = [1, 1]} : vector<4x128xf32> to vector<1x128xf32>
      %73 = vector.extract_strided_slice %53 {offsets = [2, 0], sizes = [1, 128], strides = [1, 1]} : vector<4x128xf32> to vector<1x128xf32>
      %74 = vector.extract_strided_slice %53 {offsets = [3, 0], sizes = [1, 128], strides = [1, 1]} : vector<4x128xf32> to vector<1x128xf32>
      %cst_28 = arith.constant 5.000000e-01 : f32
      %75 = vector.broadcast %cst_28 : f32 to vector<1x128xf32>
      %76 = arith.mulf %75, %69 : vector<1x128xf32>
      %77 = arith.subf %67, %76 : vector<1x128xf32>
      %cst_29 = arith.constant 5.000000e-01 : f32
      %78 = vector.broadcast %cst_29 : f32 to vector<1x128xf32>
      %79 = arith.mulf %78, %70 : vector<1x128xf32>
      %80 = arith.subf %68, %79 : vector<1x128xf32>
      %cst_30 = arith.constant 5.000000e-01 : f32
      %81 = vector.broadcast %cst_30 : f32 to vector<1x128xf32>
      %82 = arith.mulf %81, %69 : vector<1x128xf32>
      %83 = arith.addf %67, %82 : vector<1x128xf32>
      %cst_31 = arith.constant 5.000000e-01 : f32
      %84 = vector.broadcast %cst_31 : f32 to vector<1x128xf32>
      %85 = arith.mulf %84, %70 : vector<1x128xf32>
      %86 = arith.addf %68, %85 : vector<1x128xf32>
      %cst_32 = arith.constant 5.000000e-01 : f32
      %87 = vector.broadcast %cst_32 : f32 to vector<1x128xf32>
      %88 = arith.mulf %87, %73 : vector<1x128xf32>
      %89 = arith.subf %71, %88 : vector<1x128xf32>
      %cst_33 = arith.constant 5.000000e-01 : f32
      %90 = vector.broadcast %cst_33 : f32 to vector<1x128xf32>
      %91 = arith.mulf %90, %74 : vector<1x128xf32>
      %92 = arith.subf %72, %91 : vector<1x128xf32>
      %cst_34 = arith.constant 5.000000e-01 : f32
      %93 = vector.broadcast %cst_34 : f32 to vector<1x128xf32>
      %94 = arith.mulf %93, %73 : vector<1x128xf32>
      %95 = arith.addf %71, %94 : vector<1x128xf32>
      %cst_35 = arith.constant 5.000000e-01 : f32
      %96 = vector.broadcast %cst_35 : f32 to vector<1x128xf32>
      %97 = arith.mulf %96, %74 : vector<1x128xf32>
      %98 = arith.addf %72, %97 : vector<1x128xf32>
      %99 = arith.subf %83, %77 : vector<1x128xf32>
      %100 = arith.subf %86, %80 : vector<1x128xf32>
      %101 = arith.mulf %99, %100 : vector<1x128xf32>
      %102 = arith.subf %95, %89 : vector<1x128xf32>
      %103 = arith.subf %98, %92 : vector<1x128xf32>
      %104 = arith.mulf %102, %103 : vector<1x128xf32>
      %105 = arith.minimumf %83, %95 : vector<1x128xf32>
      %106 = arith.maximumf %77, %89 : vector<1x128xf32>
      %107 = arith.subf %105, %106 : vector<1x128xf32>
      %cst_36 = arith.constant 0.000000e+00 : f32
      %108 = vector.broadcast %cst_36 : f32 to vector<1x128xf32>
      %109 = arith.maximumf %107, %108 : vector<1x128xf32>
      %110 = arith.minimumf %86, %98 : vector<1x128xf32>
      %111 = arith.maximumf %80, %92 : vector<1x128xf32>
      %112 = arith.subf %110, %111 : vector<1x128xf32>
      %cst_37 = arith.constant 0.000000e+00 : f32
      %113 = vector.broadcast %cst_37 : f32 to vector<1x128xf32>
      %114 = arith.maximumf %112, %113 : vector<1x128xf32>
      %115 = arith.mulf %109, %114 : vector<1x128xf32>
      %116 = arith.addf %101, %104 : vector<1x128xf32>
      %117 = arith.subf %116, %115 : vector<1x128xf32>
      %cst_38 = arith.constant 1.000000e-07 : f32
      %118 = vector.broadcast %cst_38 : f32 to vector<1x128xf32>
      %119 = arith.addf %117, %118 : vector<1x128xf32>
      %120 = tpu.reciprocal %119 {approx = true} : vector<1x128xf32> -> vector<1x128xf32>
      %121 = arith.mulf %115, %120 : vector<1x128xf32>
      %122 = arith.maximumf %83, %95 : vector<1x128xf32>
      %123 = arith.minimumf %77, %89 : vector<1x128xf32>
      %124 = arith.subf %122, %123 : vector<1x128xf32>
      %125 = arith.maximumf %86, %98 : vector<1x128xf32>
      %126 = arith.minimumf %80, %92 : vector<1x128xf32>
      %127 = arith.subf %125, %126 : vector<1x128xf32>
      %128 = arith.mulf %124, %127 : vector<1x128xf32>
      %129 = arith.subf %128, %117 : vector<1x128xf32>
      %cst_39 = arith.constant 1.000000e-07 : f32
      %130 = vector.broadcast %cst_39 : f32 to vector<1x128xf32>
      %131 = arith.addf %128, %130 : vector<1x128xf32>
      %132 = tpu.reciprocal %131 {approx = true} : vector<1x128xf32> -> vector<1x128xf32>
      %133 = arith.mulf %129, %132 : vector<1x128xf32>
      %134 = arith.subf %121, %133 : vector<1x128xf32>
      %cst_40 = arith.constant 1.000000e+00 : f32
      %135 = vector.broadcast %cst_40 : f32 to vector<1x128xf32>
      %136 = arith.subf %135, %134 : vector<1x128xf32>
      %cst_41 = arith.constant 0.000000e+00 : f32
      %137 = vector.broadcast %cst_41 : f32 to vector<1x128xf32>
      %138 = arith.select %56, %136, %137 : vector<1x128xi1>, vector<1x128xf32>
      %139 = vector.shape_cast %138 : vector<1x128xf32> to vector<1x1x128xf32>
      %cst_42 = arith.constant dense<0.000000e+00> : vector<1xf32>
      %140 = vector.multi_reduction <add>, %139, %cst_42 [1, 2] : vector<1x1x128xf32> to vector<1xf32>
      %141 = vector.shape_cast %140 : vector<1xf32> to vector<1x1x1xf32>
      %142 = vector.extract %141[0, 0, 0] : f32 from vector<1x1x1xf32>
      %c0_i32_43 = arith.constant 0 : i32
      %143 = vector.broadcast %c0_i32_43 : i32 to vector<1x2xi32>
      %144 = arith.cmpi eq, %0, %143 : vector<1x2xi32>
      %145 = vector.broadcast %66 : f32 to vector<1x2xf32>
      %146 = vector.broadcast %142 : f32 to vector<1x2xf32>
      %147 = arith.select %144, %145, %146 : vector<1x2xi1>, vector<1x2xf32>
      %c0_44 = arith.constant 0 : index
      %c0_45 = arith.constant 0 : index
      %148 = vector.load %arg6[%c0_44, %c0_45] : memref<1x2xf32, #tpu.memory_space<vmem>>, vector<1x2xf32>
      tpu.vector_store %arg6[%c0_44, %c0_45], %147 {strides = array<i32>} : memref<1x2xf32, #tpu.memory_space<vmem>>, vector<1x2xf32>,
    } else {
    }
    %c0 = arith.constant 0 : index
    %c0_1 = arith.constant 0 : index
    %4 = vector.load %arg1[%c0, %c0_1] : memref<16x128xf32, #tpu.memory_space<vmem>>, vector<16x128xf32>
    %c0_2 = arith.constant 0 : index
    %c0_3 = arith.constant 0 : index
    %5 = vector.load %arg2[%c0_2, %c0_3] : memref<16x1xi32, #tpu.memory_space<vmem>>, vector<16x1xi32>
    %c0_4 = arith.constant 0 : index
    %c0_5 = arith.constant 0 : index
    %6 = vector.load %arg3[%c0_4, %c0_5] : memref<1x128xf32, #tpu.memory_space<vmem>>, vector<1x128xf32>
    %cst = arith.constant dense<0xFF800000> : vector<16xf32>
    %7 = vector.multi_reduction <maximumf>, %4, %cst [1] : vector<16x128xf32> to vector<16xf32>
    %8 = vector.shape_cast %7 : vector<16xf32> to vector<16x1xf32>
    %9 = vector.broadcast %8 : vector<16x1xf32> to vector<16x128xf32>
    %10 = arith.subf %4, %9 : vector<16x128xf32>
    %11 = math.exp %10 : vector<16x128xf32>
    %cst_6 = arith.constant dense<0.000000e+00> : vector<16xf32>
    %12 = vector.multi_reduction <add>, %11, %cst_6 [1] : vector<16x128xf32> to vector<16xf32>
    %13 = vector.shape_cast %12 : vector<16xf32> to vector<16x1xf32>
    %14 = math.log %13 : vector<16x1xf32>
    %15 = tpu.iota {dimensions = array<i32: 1>} : vector<16x128xi32>
    %16 = vector.broadcast %5 : vector<16x1xi32> to vector<16x128xi32>
    %17 = arith.cmpi eq, %15, %16 : vector<16x128xi32>
    %cst_7 = arith.constant 0.000000e+00 : f32
    %18 = vector.broadcast %cst_7 : f32 to vector<16x128xf32>
    %19 = arith.select %17, %10, %18 : vector<16x128xi1>, vector<16x128xf32>
    %cst_8 = arith.constant dense<0.000000e+00> : vector<16xf32>
    %20 = vector.multi_reduction <add>, %19, %cst_8 [1] : vector<16x128xf32> to vector<16xf32>
    %21 = vector.shape_cast %20 : vector<16xf32> to vector<16x1xf32>
    %cst_9 = arith.constant 0.000000e+00 : f32
    %22 = vector.shape_cast %6 : vector<1x128xf32> to vector<1x128xf32>
    %23 = vector.broadcast %22 : vector<1x128xf32> to vector<16x128xf32>
    %24 = vector.broadcast %cst_9 : f32 to vector<16x128xf32>
    %25 = arith.select %17, %23, %24 : vector<16x128xi1>, vector<16x128xf32>
    %cst_10 = arith.constant dense<0.000000e+00> : vector<16xf32>
    %26 = vector.multi_reduction <add>, %25, %cst_10 [1] : vector<16x128xf32> to vector<16xf32>
    %27 = vector.shape_cast %26 : vector<16xf32> to vector<16x1xf32>
    %28 = arith.subf %14, %21 : vector<16x1xf32>
    %29 = arith.mulf %27, %28 : vector<16x1xf32>
    %30 = vector.shape_cast %29 : vector<16x1xf32> to vector<1x16x1xf32>
    %cst_11 = arith.constant dense<0.000000e+00> : vector<1xf32>
    %31 = vector.multi_reduction <add>, %30, %cst_11 [1, 2] : vector<1x16x1xf32> to vector<1xf32>
    %32 = vector.shape_cast %31 : vector<1xf32> to vector<1x1x1xf32>
    %33 = vector.extract %32[0, 0, 0] : f32 from vector<1x1x1xf32>
    %34 = vector.shape_cast %27 : vector<16x1xf32> to vector<1x16x1xf32>
    %cst_12 = arith.constant dense<0.000000e+00> : vector<1xf32>
    %35 = vector.multi_reduction <add>, %34, %cst_12 [1, 2] : vector<1x16x1xf32> to vector<1xf32>
    %36 = vector.shape_cast %35 : vector<1xf32> to vector<1x1x1xf32>
    %37 = vector.extract %36[0, 0, 0] : f32 from vector<1x1x1xf32>
    %c0_13 = arith.constant 0 : index
    %c0_14 = arith.constant 0 : index
    %38 = vector.load %arg7[%c0_13, %c0_14] : memref<1x2xf32, #tpu.memory_space<vmem>>, vector<1x2xf32>
    %c0_i32_15 = arith.constant 0 : i32
    %39 = vector.broadcast %c0_i32_15 : i32 to vector<1x2xi32>
    %40 = arith.cmpi eq, %0, %39 : vector<1x2xi32>
    %41 = vector.broadcast %33 : f32 to vector<1x2xf32>
    %42 = vector.broadcast %37 : f32 to vector<1x2xf32>
    %43 = arith.select %40, %41, %42 : vector<1x2xi1>, vector<1x2xf32>
    %44 = arith.addf %38, %43 : vector<1x2xf32>
    %c0_16 = arith.constant 0 : index
    %c0_17 = arith.constant 0 : index
    %45 = vector.load %arg7[%c0_16, %c0_17] : memref<1x2xf32, #tpu.memory_space<vmem>>, vector<1x2xf32>
    tpu.vector_store %arg7[%c0_16, %c0_17], %44 {strides = array<i32>} : memref<1x2xf32, #tpu.memory_space<vmem>>, vector<1x2xf32>,
    %c0_i32_18 = arith.constant 0 : i32
    %46 = arith.cmpi eq, %arg0, %c0_i32_18 : i32
    %47 = arith.extui %46 : i1 to i32
    %c0_i32_19 = arith.constant 0 : i32
    %48 = arith.cmpi ne, %47, %c0_i32_19 : i32
    scf.if %48 {
      %c0_20 = arith.constant 0 : index
      %c0_21 = arith.constant 0 : index
      %49 = vector.load %arg7[%c0_20, %c0_21] : memref<1x2xf32, #tpu.memory_space<vmem>>, vector<1x2xf32>
      %c0_22 = arith.constant 0 : index
      %c0_23 = arith.constant 0 : index
      %50 = vector.load %arg5[%c0_22, %c0_23] : memref<1x2xf32, #tpu.memory_space<vmem>>, vector<1x2xf32>
      tpu.vector_store %arg5[%c0_22, %c0_23], %49 {strides = array<i32>} : memref<1x2xf32, #tpu.memory_space<vmem>>, vector<1x2xf32>,
    } else {
    }
    return
  }
  func.func @transform_0(%arg0: i32) -> (i32, i32) {
    %c0_i32 = arith.constant 0 : i32
    %c0_i32_0 = arith.constant 0 : i32
    return %arg0, %c0_i32 : i32, i32
  }
  func.func @transform_1(%arg0: i32) -> (i32, i32) {
    %c0_i32 = arith.constant 0 : i32
    %c0_i32_0 = arith.constant 0 : i32
    return %arg0, %c0_i32 : i32, i32
  }
  func.func @transform_2(%arg0: i32) -> (i32, i32) {
    %c0_i32 = arith.constant 0 : i32
    %c0_i32_0 = arith.constant 0 : i32
    %c0_i32_1 = arith.constant 0 : i32
    return %c0_i32, %c0_i32_0 : i32, i32
  }
  func.func @transform_3(%arg0: i32) -> (i32, i32) {
    %c0_i32 = arith.constant 0 : i32
    %c0_i32_0 = arith.constant 0 : i32
    %c0_i32_1 = arith.constant 0 : i32
    return %c0_i32, %c0_i32_0 : i32, i32
  }
  func.func @transform_4(%arg0: i32) -> (i32, i32) {
    %c0_i32 = arith.constant 0 : i32
    %c0_i32_0 = arith.constant 0 : i32
    %c0_i32_1 = arith.constant 0 : i32
    return %c0_i32, %c0_i32_0 : i32, i32
  }
  func.func @transform_5(%arg0: i32) -> (i32, i32) {
    %c0_i32 = arith.constant 0 : i32
    %c0_i32_0 = arith.constant 0 : i32
    %c0_i32_1 = arith.constant 0 : i32
    return %c0_i32, %c0_i32_0 : i32, i32
  }
}

</mosaic_0001>

<llo_original>
// kernel: tpu_custom_call.1
$region0: #{tpu_custom_call.1}
  #allocation0 [shape = 'u32[]', space=smem, size = 0x4, offset = 0x4, fixed_abs, tag = 'smem constant byte address 0x4 - core index']
  #allocation1 [shape = 'u32[144,128]{1,0:T(1,128)}', space=vmem, size = 0x12000, scoped, tag = 'internal scratch']
  #allocation2 [shape = 'f32[1,2]{1,0:T(1,128)}', space=vmem, size = 0x200, scoped, tag = 'scratch operand']
  %s0 = inlined_call_operand.vmem [shape: f32[16,128], index: 0, kind: input, shape index: {}]
  %s1 = inlined_call_operand.vmem [shape: s32[16,1], index: 1, kind: input, shape index: {}]
  %s2 = inlined_call_operand.hbm [shape: f32[1,128], index: 2, kind: input, shape index: {}]
  %s3 = inlined_call_operand.vmem [shape: f32[8,128], index: 3, kind: input, shape index: {}]
  %s4 = inlined_call_operand.hbm [shape: f32[1,2], index: 4, kind: output, shape index: {0}]
  %s5 = inlined_call_operand.hbm [shape: f32[1,2], index: 5, kind: output, shape index: {1}]
  %6 = xla_tuple %s4, %s5
  %s7 = sld [smem:[#allocation0]]
  $region46: #{tpu_custom_call.1} parent=0
    _
  %s9 = ssub.s32 1, %s7
  %s10 = scalar_select 0, %s9, %s7
  $region1: #{tpu_custom_call.1} parent=0
    #allocation3 [shape = 'u8[512]{0}', space=vmem, size = 0x400, scoped, tag = 'input window, operand 2, single buffered']
    #allocation4 [shape = 's32[1]{0}', space=sflag, size = 0x4, scoped, tag = 'scoped memory for tpu_custom_call.1']
    #allocation5 [shape = 's32[1]{0}', space=sflag, size = 0x4, scoped, tag = 'scoped memory for tpu_custom_call.1']
    #allocation6 [shape = 'u8[512]{0}', space=vmem, size = 0x400, scoped, tag = 'output window, operand 0, single buffered']
    #allocation7 [shape = 'u8[512]{0}', space=vmem, size = 0x400, scoped, tag = 'output window, operand 1, single buffered']
    #allocation8 [shape = 's32[1]{0}', space=sflag, size = 0x4, scoped, tag = 'scoped memory for tpu_custom_call.1']
    %11 = vsyncpa [#allocation4], 0
    %12 = vsyncpa [#allocation5], 0
    %13 = vsyncpa [#allocation8], 0
    // Predicated region
    $region2: #{tpu_custom_call.1} parent=1 // pred_check
      _
    $region3: #{tpu_custom_call.1} parent=1 // pred_check_branch
      %15 = sbr.rel (0) target = $region5
    $region4: #{tpu_custom_call.1} parent=1 // pred_region
      _
    $region5: #{tpu_custom_call.1} parent=1 // pred_fallthru
      _
    // Predicated region
    $region6: #{tpu_custom_call.1} parent=1 // pred_check
      _
    $region7: #{tpu_custom_call.1} parent=1 // pred_check_branch
      %17 = sbr.rel (0) target = $region9
    $region8: #{tpu_custom_call.1} parent=1 // pred_region
      _
    $region9: #{tpu_custom_call.1} parent=1 // pred_fallthru
      _
    // Predicated region
    $region10: #{tpu_custom_call.1} parent=1 // pred_check
      _
    $region11: #{tpu_custom_call.1} parent=1 // pred_check_branch
      %19 = sbr.rel (0) target = $region13
    $region12: #{tpu_custom_call.1} parent=1 // pred_region
      %s21 = ssub.s32 16, 16
      %22 = vsyncadd [#allocation4], %s21
      %s24 = sshll.u32 [#allocation3], 4
      %s25 = int_to_ptr.vmem [resolvable:$true] %s24
      %27 = dma.hbm_to_vmem [thread:$0]  %s2, 16, %s25, [#allocation4]
    $region13: #{tpu_custom_call.1} parent=1 // pred_fallthru
      _
    // Predicated region
    $region14: #{tpu_custom_call.1} parent=1 // pred_check
      _
    $region15: #{tpu_custom_call.1} parent=1 // pred_check_branch
      %29 = sbr.rel (0) target = $region17
    $region16: #{tpu_custom_call.1} parent=1 // pred_region
      _
    $region17: #{tpu_custom_call.1} parent=1 // pred_fallthru
      _
    // Predicated region
    $region18: #{tpu_custom_call.1} parent=1 // pred_check
      _
    $region19: #{tpu_custom_call.1} parent=1 // pred_check_branch
      %31 = sbr.rel (0) target = $region21
    $region20: #{tpu_custom_call.1} parent=1 // pred_region
      %32 = dma.done [#allocation4], 16
    $region21: #{tpu_custom_call.1} parent=1 // pred_fallthru
      _
    %v33 = vlaneseq
    %v34 = vand.u32 %v33, 127
    %p35 = scmp.eq.s32.totalorder 0, 0
    // Predicated region
    $region22: #{tpu_custom_call.1} parent=1 // pred_check
      %p36 = pneg %p35
    $region23: #{tpu_custom_call.1} parent=1 // pred_check_branch
      %38 = sbr.rel (%p36) target = $region25
    $region24: #{tpu_custom_call.1} parent=1 // pred_region
      %vm39 = vcmask 8192
      %40 = vst.msk [vmem:[#allocation2] sm:$0x1] %vm39, 0.0
      %v41 = vld [vmem:[%s3] sm:$0xff]
      %vm42 = vcmp.lt.s32.totalorder %v34, 6
      %v44 = vrot.slane %v41, 4
      %v46 = vsub.f32 %v41, %v44
      %v47 = vand.u32 2147483647, %v46
      %vm48 = vcmask 1043456
      %v49 = vsel %vm48, %v47, 0.0
      %v50 = vrot.slane %v49, 4
      %v51 = vadd.f32 %v49, %v50
      %v52 = vrot.slane %v51, 2
      %v53 = vadd.f32 %v51, %v52
      %v54 = vrot.slane %v53, 1
      %v55 = vadd.f32 %v53, %v54
      %v56 = vsel %vm42, %v55, 0.0
      %vm57 = vcmask 1040384
      %v58 = vsel %vm57, %v56, 0.0
      %59 = vadd.xlane.f32.xlu0 %v58
      %v60 = vpop.xlane.xlu0 %59
      %v61 = vrot.slane %v60, 4
      %v62 = vadd.f32 %v60, %v61
      %v63 = vrot.slane %v62, 2
      %v64 = vadd.f32 %v62, %v63
      %v65 = vrot.slane %v64, 1
      %v66 = vadd.f32 %v64, %v65
      %s67 = vtos %v66
      %v68 = vmul.f32 %v41, 0.5
      %v70 = vrot.slane %v68, 2
      %v72 = vsub.f32 %v41, %v70
      %v73 = vadd.f32 %v41, %v70
      %v74 = vsub.f32 %v73, %v72
      %v76 = vrot.slane %v74, 1
      %v78 = vmul.f32 %v74, %v76
      %v80 = vrot.slane %v73, 4
      %v82 = vmin.f32 %v73, %v80
      %v84 = vrot.slane %v72, 4
      %v86 = vmax.f32 %v72, %v84
      %v87 = vsub.f32 %v82, %v86
      %v88 = vmax.f32 %v87, 0.0
      %v90 = vrot.slane %v88, 1
      %v92 = vmul.f32 %v88, %v90
      %v94 = vrot.slane %v78, 4
      %v96 = vadd.f32 %v78, %v94
      %v97 = vsub.f32 %v96, %v92
      %v98 = vadd.f32 %v97, 1e-07
      %v99 = vrcp.pop %v98
      %v100 = vmul.f32 %v92, %v99
      %v101 = vmax.f32 %v73, %v80
      %v102 = vmin.f32 %v72, %v84
      %v103 = vsub.f32 %v101, %v102
      %v105 = vrot.slane %v103, 1
      %v107 = vmul.f32 %v103, %v105
      %v108 = vsub.f32 %v107, %v97
      %v109 = vadd.f32 %v107, 1e-07
      %v110 = vrcp.pop %v109
      %v111 = vmul.f32 %v108, %v110
      %v112 = vsub.f32 %v100, %v111
      %v113 = vsub.f32 1.0, %v112
      %v114 = vsel %vm42, %v113, 0.0
      %v115 = vsel %vm57, %v114, 0.0
      %116 = vadd.xlane.f32.xlu0 %v115
      %v117 = vpop.xlane.xlu0 %116
      %v118 = vrot.slane %v117, 4
      %v119 = vadd.f32 %v117, %v118
      %v120 = vrot.slane %v119, 2
      %v121 = vadd.f32 %v119, %v120
      %v122 = vrot.slane %v121, 1
      %v123 = vadd.f32 %v121, %v122
      %s124 = vtos %v123
      %vm125 = vcmp.eq.s32.totalorder %v34, 0
      %v126 = vstv %s67
      %v127 = vstv %s124
      %v128 = vsel %vm125, %v126, %v127
      %129 = vst.msk [vmem:[#allocation7] sm:$0x1] %vm39, %v128
    $region25: #{tpu_custom_call.1} parent=1 // pred_fallthru
      _
    %v130 = vld [vmem:[%s0] sm:$0xff]
    %v131 = vld [vmem:[%s0 + $0x8] sm:$0xff]
    %v132 = vld [vmem:[%s1] sm:$0xff]
    %v133 = vld [vmem:[%s1 + $0x8] sm:$0xff]
    %v134 = vld [vmem:[#allocation3] sm:$0x1]
    %135 = vmax.xlane.f32.xlu0 %v130
    %v136 = vpop.xlane.xlu0 %135
    %137 = vmax.xlane.f32.xlu0 %v131
    %v138 = vpop.xlane.xlu0 %137
    %v139 = vsub.f32 %v130, %v136
    %v140 = vsub.f32 %v131, %v138
    %v141 = vmul.f32 %v139, 1.442695
    %v142 = vpow.pop %v141
    %v143 = vmul.f32 %v140, 1.442695
    %v144 = vpow.pop %v143
    %145 = vadd.xlane.f32.xlu0 %v142
    %v146 = vpop.xlane.xlu0 %145
    %147 = vadd.xlane.f32.xlu0 %v144
    %v148 = vpop.xlane.xlu0 %147
    %v149 = vlog2.pop %v146
    %v150 = vmul.f32 %v149, 0.6931472
    %v151 = vlog2.pop %v148
    %v152 = vmul.f32 %v151, 0.6931472
    %153 = vset.pattern.permute.xlu0 0
    %154 = vperm.xlu0 %153, %v132
    %v155 = vpop.permute.xlu0 %154
    %156 = vset.pattern.permute.xlu0 0
    %157 = vperm.xlu0 %156, %v133
    %v158 = vpop.permute.xlu0 %157
    %vm159 = vcmp.eq.s32.totalorder %v34, %v155
    %vm160 = vcmp.eq.s32.totalorder %v34, %v158
    %v161 = vsel %vm159, %v139, 0.0
    %v162 = vsel %vm160, %v140, 0.0
    %163 = vadd.xlane.f32.xlu0 %v161
    %v164 = vpop.xlane.xlu0 %163
    %165 = vadd.xlane.f32.xlu0 %v162
    %v166 = vpop.xlane.xlu0 %165
    %v168 = vlaneseq
    %v169 = vshrl.u32 %v168, 7
    %v170 = vsub.s32 0, %v169
    %v171 = vrot.slane %v134, %v170
    %v173 = vsel %vm159, %v171, 0.0
    %v174 = vsel %vm160, %v171, 0.0
    %175 = vadd.xlane.f32.xlu0 %v173
    %v176 = vpop.xlane.xlu0 %175
    %177 = vadd.xlane.f32.xlu0 %v174
    %v178 = vpop.xlane.xlu0 %177
    %v179 = vsub.f32 %v150, %v164
    %v180 = vsub.f32 %v152, %v166
    %v181 = vmul.f32 %v176, %v179
    %v182 = vmul.f32 %v178, %v180
    %vm183 = vcmask 7168
    %v184 = vsel %vm183, %v181, 0.0
    %v185 = vsel %vm183, %v182, 0.0
    %v186 = vadd.f32 %v184, %v185
    %187 = vadd.xlane.f32.xlu0 %v186
    %v188 = vpop.xlane.xlu0 %187
    %v189 = vrot.slane %v188, 4
    %v190 = vadd.f32 %v188, %v189
    %v191 = vrot.slane %v190, 2
    %v192 = vadd.f32 %v190, %v191
    %v193 = vrot.slane %v192, 1
    %v194 = vadd.f32 %v192, %v193
    %s195 = vtos %v194
    %v196 = vsel %vm183, %v176, 0.0
    %v197 = vsel %vm183, %v178, 0.0
    %v198 = vadd.f32 %v196, %v197
    %199 = vadd.xlane.f32.xlu0 %v198
    %v200 = vpop.xlane.xlu0 %199
    %v201 = vrot.slane %v200, 4
    %v202 = vadd.f32 %v200, %v201
    %v203 = vrot.slane %v202, 2
    %v204 = vadd.f32 %v202, %v203
    %v205 = vrot.slane %v204, 1
    %v206 = vadd.f32 %v204, %v205
    %s207 = vtos %v206
    %v208 = vld [vmem:[#allocation2] sm:$0x1]
    %vm209 = vcmp.eq.s32.totalorder %v34, 0
    %v210 = vstv %s195
    %v211 = vstv %s207
    %v212 = vsel %vm209, %v210, %v211
    %v213 = vadd.f32 %v208, %v212
    %vm214 = vcmask 8192
    %215 = vst.msk [vmem:[#allocation2] sm:$0x1] %vm214, %v213
    // Predicated region
    $region26: #{tpu_custom_call.1} parent=1 // pred_check
      %p216 = pneg %p35
    $region27: #{tpu_custom_call.1} parent=1 // pred_check_branch
      %218 = sbr.rel (%p216) target = $region29
    $region28: #{tpu_custom_call.1} parent=1 // pred_region
      %v219 = vld [vmem:[#allocation2] sm:$0x1]
      %220 = vst.msk [vmem:[#allocation6] sm:$0x1] %vm214, %v219
    $region29: #{tpu_custom_call.1} parent=1 // pred_fallthru
      _
    // Predicated region
    $region30: #{tpu_custom_call.1} parent=1 // pred_check
      _
    $region31: #{tpu_custom_call.1} parent=1 // pred_check_branch
      %222 = sbr.rel (0) target = $region33
    $region32: #{tpu_custom_call.1} parent=1 // pred_region
      %s224 = ssub.s32 16, 16
      %225 = vsyncadd [#allocation5], %s224
      %s227 = sshll.u32 [#allocation6], 4
      %s228 = int_to_ptr.vmem [resolvable:$true] %s227
      %230 = dma.vmem_to_hbm [thread:$0]  %s228, 16, %s4, [#allocation5]
    $region33: #{tpu_custom_call.1} parent=1 // pred_fallthru
      _
    // Predicated region
    $region34: #{tpu_custom_call.1} parent=1 // pred_check
      _
    $region35: #{tpu_custom_call.1} parent=1 // pred_check_branch
      %232 = sbr.rel (0) target = $region37
    $region36: #{tpu_custom_call.1} parent=1 // pred_region
      %s234 = ssub.s32 16, 16
      %235 = vsyncadd [#allocation8], %s234
      %s237 = sshll.u32 [#allocation7], 4
      %s238 = int_to_ptr.vmem [resolvable:$true] %s237
      %240 = dma.vmem_to_hbm [thread:$0]  %s238, 16, %s5, [#allocation8]
    $region37: #{tpu_custom_call.1} parent=1 // pred_fallthru
      _
    // Predicated region
    $region38: #{tpu_custom_call.1} parent=1 // pred_check
      _
    $region39: #{tpu_custom_call.1} parent=1 // pred_check_branch
      %242 = sbr.rel (0) target = $region41
    $region40: #{tpu_custom_call.1} parent=1 // pred_region
      %243 = dma.done [#allocation5], 16
    $region41: #{tpu_custom_call.1} parent=1 // pred_fallthru
      _
    // Predicated region
    $region42: #{tpu_custom_call.1} parent=1 // pred_check
      _
    $region43: #{tpu_custom_call.1} parent=1 // pred_check_branch
      %245 = sbr.rel (0) target = $region45
    $region44: #{tpu_custom_call.1} parent=1 // pred_region
      %246 = dma.done [#allocation8], 16
    $region45: #{tpu_custom_call.1} parent=1 // pred_fallthru
      _
    %247 = vsyncpa [#allocation4], 1
    %248 = vsyncpa [#allocation5], 1
    %249 = vsyncpa [#allocation8], 1

</llo_original>
